<compile_context>
chip_gen: v7x
topology: tpu7x:2x2x1
jax: 0.10.0
libtpu: 0.0.40
codegen_flags: <defaults>
</compile_context>

<pallas_src>
import math

import jax
import jax.numpy as jnp
from jax.experimental import pallas as pl
from jax.experimental.pallas import tpu as pltpu


def _affine_kernel(scale_ref, bias_ref, x_ref, o_ref):
    # scale_ref, bias_ref: (1,) scalars resident in SMEM
    # x_ref, o_ref       : (block_rows, 128) tiles in VMEM
    x = x_ref[...]
    s = scale_ref[0].astype(x.dtype)
    b = bias_ref[0].astype(x.dtype)
    o_ref[...] = (x * s + b).astype(o_ref.dtype)


def learnable_affine_block(x, scale, bias, *, block_rows=2048):
    """Applies out = scale * x + bias elementwise.

    x    : any shape / dtype (e.g. NCHW feature map)
    scale: shape (1,) parameter
    bias : shape (1,) parameter
    """
    orig_shape = x.shape
    dtype = x.dtype
    lane = 128

    total = int(math.prod(orig_shape))
    rows = -(-total // lane)                        # cdiv(total, 128)
    # Cap the tile to the data size, keep it a multiple of 8 sublanes.
    block_rows = min(block_rows, -(-rows // 8) * 8)
    padded_rows = -(-rows // block_rows) * block_rows
    padded_total = padded_rows * lane

    flat = x.reshape(-1)
    if padded_total != total:
        # Tail padding is filled with zeros; it just becomes `bias` in the
        # output and is sliced off below (no NaN / garbage hazard).
        flat = jnp.pad(flat, (0, padded_total - total))
    x2d = flat.reshape(padded_rows, lane)

    grid = (padded_rows // block_rows,)

    out2d = pl.pallas_call(
        _affine_kernel,
        out_shape=jax.ShapeDtypeStruct((padded_rows, lane), dtype),
        grid_spec=pltpu.PrefetchScalarGridSpec(
            num_scalar_prefetch=0,
            grid=grid,
            in_specs=[
                # Tiny scalar params: keep them resident in SMEM, no tiling.
                pl.BlockSpec(memory_space=pltpu.MemorySpace.SMEM),
                pl.BlockSpec(memory_space=pltpu.MemorySpace.SMEM),
                # Lane-dense, bounded tiles of the flattened input.
                pl.BlockSpec((block_rows, lane), lambda i: (i, 0)),
            ],
            out_specs=pl.BlockSpec((block_rows, lane), lambda i: (i, 0)),
        ),
        compiler_params=pltpu.CompilerParams(
            # Every row-tile is independent -> shard across TensorCores.
            dimension_semantics=("parallel",),
            # Explicit VMEM budget; our double-buffered usage is only ~4 MiB,
            # well under the 64 MiB physical VMEM of v7x.
            vmem_limit_bytes=32 * 1024 * 1024,
        ),
    )(scale.reshape(1), bias.reshape(1), x2d)

    return out2d.reshape(-1)[:total].reshape(orig_shape)


def _reference(x, scale, bias):
    return scale[0] * x + bias[0]


if __name__ == "__main__":
    key = jax.random.PRNGKey(0)
    k_x, = jax.random.split(key, 1)

    # Small NCHW feature map, consistent with the backbone block.
    N, C, H, W = 2, 4, 16, 16
    x = jax.random.normal(k_x, (N, C, H, W), dtype=jnp.float32)
    # Deterministic synthetic parameters (PyTorch init is scale=1.0, bias=0.0;
    # use non-trivial values so the test actually exercises the math).
    scale = jnp.array([1.7], dtype=jnp.float32)
    bias = jnp.array([-0.3], dtype=jnp.float32)

    out = learnable_affine_block(x, scale, bias)
    out = jax.block_until_ready(out)

    ref = _reference(x, scale, bias)
    assert out.shape == (N, C, H, W)
    assert out.dtype == x.dtype
    assert jnp.allclose(out, ref, atol=1e-6, rtol=1e-6)
    print("KERNEL_OK")
</pallas_src>

<mosaic_0001>
module attributes {stable_mosaic.version = 11 : i64} {
  func.func @_affine_kernel(%arg0: i32, %arg1: memref<1xf32, #tpu.memory_space<smem>>, %arg2: memref<1xf32, #tpu.memory_space<smem>>, %arg3: memref<16x128xf32, #tpu.memory_space<vmem>>, %arg4: memref<16x128xf32, #tpu.memory_space<vmem>>) attributes {dimension_semantics = [#tpu.dimension_semantics<parallel>], iteration_bounds = array<i64: 1>, scalar_prefetch = 0 : i64, scratch_operands = 0 : i64, tpu.core_type = #tpu.core_type<tc>, window_params = [{transform_indices = @transform_0, window_bounds = array<i64: 1>}, {transform_indices = @transform_1, window_bounds = array<i64: 1>}, {transform_indices = @transform_2, window_bounds = array<i64: 16, 128>}, {transform_indices = @transform_3, window_bounds = array<i64: 16, 128>}]} {
    %c0 = arith.constant 0 : index
    %c0_0 = arith.constant 0 : index
    %0 = vector.load %arg3[%c0, %c0_0] : memref<16x128xf32, #tpu.memory_space<vmem>>, vector<16x128xf32>
    %c0_1 = arith.constant 0 : index
    %1 = memref.load %arg1[%c0_1] : memref<1xf32, #tpu.memory_space<smem>>
    %c0_2 = arith.constant 0 : index
    %2 = memref.load %arg2[%c0_2] : memref<1xf32, #tpu.memory_space<smem>>
    %3 = vector.broadcast %1 : f32 to vector<16x128xf32>
    %4 = arith.mulf %0, %3 : vector<16x128xf32>
    %5 = vector.broadcast %2 : f32 to vector<16x128xf32>
    %6 = arith.addf %4, %5 : vector<16x128xf32>
    %c0_3 = arith.constant 0 : index
    %c0_4 = arith.constant 0 : index
    %7 = vector.load %arg4[%c0_3, %c0_4] : memref<16x128xf32, #tpu.memory_space<vmem>>, vector<16x128xf32>
    tpu.vector_store %arg4[%c0_3, %c0_4], %6 {strides = array<i32>} : memref<16x128xf32, #tpu.memory_space<vmem>>, vector<16x128xf32>,
    return
  }
  func.func @transform_0(%arg0: i32) -> i32 {
    %c0_i32 = arith.constant 0 : i32
    %c0_i32_0 = arith.constant 0 : i32
    return %c0_i32 : i32
  }
  func.func @transform_1(%arg0: i32) -> i32 {
    %c0_i32 = arith.constant 0 : i32
    %c0_i32_0 = arith.constant 0 : i32
    return %c0_i32 : i32
  }
  func.func @transform_2(%arg0: i32) -> (i32, i32) {
    %c0_i32 = arith.constant 0 : i32
    %c0_i32_0 = arith.constant 0 : i32
    return %arg0, %c0_i32 : i32, i32
  }
  func.func @transform_3(%arg0: i32) -> (i32, i32) {
    %c0_i32 = arith.constant 0 : i32
    %c0_i32_0 = arith.constant 0 : i32
    return %arg0, %c0_i32 : i32, i32
  }
}

</mosaic_0001>

<llo_original>
// kernel: tpu_custom_call.1
$region0: #{tpu_custom_call.1}
  #allocation0 [shape = 'u32[]', space=smem, size = 0x4, offset = 0x4, fixed_abs, tag = 'smem constant byte address 0x4 - core index']
  #allocation1 [shape = 'u32[144,128]{1,0:T(1,128)}', space=vmem, size = 0x12000, scoped, tag = 'internal scratch']
  #allocation2 [shape = 'f32[1]{0:T(128)S(6)}', space=smem, size = 0x200, scoped, tag = 'scoped memory for tpu_custom_call.1']
  #allocation3 [shape = 'f32[1]{0:T(128)S(6)}', space=smem, size = 0x200, scoped, tag = 'scoped memory for tpu_custom_call.1']
  %s0 = inlined_call_operand.<no memory space> [shape: f32[1], index: 0, kind: input, shape index: {}]
  %s1 = inlined_call_operand.<no memory space> [shape: f32[1], index: 1, kind: input, shape index: {}]
  %s2 = inlined_call_operand.hbm [shape: f32[16,128], index: 2, kind: input, shape index: {}]
  %s3 = inlined_call_operand.hbm [shape: f32[16,128], index: 3, kind: output, shape index: {}]
  %s4 = sld [smem:[#allocation0]]
  $region26: #{tpu_custom_call.1} parent=0
    _
  %s6 = ssub.s32 1, %s4
  %s7 = scalar_select 0, %s6, %s4
  %8 = sst [smem:[#allocation2]] %s0
  %9 = sst [smem:[#allocation3]] %s1
  $region1: #{tpu_custom_call.1} parent=0
    #allocation4 [shape = 'u8[8192]{0}', space=vmem, size = 0x2000, scoped, tag = 'input window, operand 2, single buffered']
    #allocation5 [shape = 's32[1]{0}', space=sflag, size = 0x4, scoped, tag = 'scoped memory for tpu_custom_call.1']
    #allocation6 [shape = 's32[1]{0}', space=sflag, size = 0x4, scoped, tag = 'scoped memory for tpu_custom_call.1']
    #allocation7 [shape = 'u8[8192]{0}', space=vmem, size = 0x2000, scoped, tag = 'output window, operand 0, single buffered']
    %10 = vsyncpa [#allocation5], 0
    %11 = vsyncpa [#allocation6], 0
    // Predicated region
    $region2: #{tpu_custom_call.1} parent=1 // pred_check
      _
    $region3: #{tpu_custom_call.1} parent=1 // pred_check_branch
      %13 = sbr.rel (0) target = $region5
    $region4: #{tpu_custom_call.1} parent=1 // pred_region
      _
    $region5: #{tpu_custom_call.1} parent=1 // pred_fallthru
      _
    // Predicated region
    $region6: #{tpu_custom_call.1} parent=1 // pred_check
      _
    $region7: #{tpu_custom_call.1} parent=1 // pred_check_branch
      %15 = sbr.rel (0) target = $region9
    $region8: #{tpu_custom_call.1} parent=1 // pred_region
      _
    $region9: #{tpu_custom_call.1} parent=1 // pred_fallthru
      _
    // Predicated region
    $region10: #{tpu_custom_call.1} parent=1 // pred_check
      _
    $region11: #{tpu_custom_call.1} parent=1 // pred_check_branch
      %17 = sbr.rel (0) target = $region13
    $region12: #{tpu_custom_call.1} parent=1 // pred_region
      %s19 = ssub.s32 256, 256
      %20 = vsyncadd [#allocation5], %s19
      %s21 = sshll.u32 [#allocation4], 4
      %s22 = int_to_ptr.vmem [resolvable:$true] %s21
      %27 = dma.hbm_to_vmem [thread:$0]  %s2, 256, %s22, [#allocation5], 128, 128, 8
    $region13: #{tpu_custom_call.1} parent=1 // pred_fallthru
      _
    // Predicated region
    $region14: #{tpu_custom_call.1} parent=1 // pred_check
      _
    $region15: #{tpu_custom_call.1} parent=1 // pred_check_branch
      %29 = sbr.rel (0) target = $region17
    $region16: #{tpu_custom_call.1} parent=1 // pred_region
      %30 = dma.done [#allocation5], 256
    $region17: #{tpu_custom_call.1} parent=1 // pred_fallthru
      _
    %v31 = vld [vmem:[#allocation4] sm:$0xff]
    %v32 = vld [vmem:[#allocation4 + $0x8] sm:$0xff]
    %s33 = sld [smem:[#allocation2]]
    %s34 = sld [smem:[#allocation3]]
    %v35 = vstv %s33
    %v36 = vmul.f32 %v31, %v35
    %v37 = vmul.f32 %v32, %v35
    %v38 = vstv %s34
    %v39 = vadd.f32 %v36, %v38
    %v40 = vadd.f32 %v37, %v38
    %41 = vst [vmem:[#allocation7] sm:$0xff] %v39
    %42 = vst [vmem:[#allocation7 + $0x8] sm:$0xff] %v40
    // Predicated region
    $region18: #{tpu_custom_call.1} parent=1 // pred_check
      _
    $region19: #{tpu_custom_call.1} parent=1 // pred_check_branch
      %44 = sbr.rel (0) target = $region21
    $region20: #{tpu_custom_call.1} parent=1 // pred_region
      %s46 = ssub.s32 256, 256
      %47 = vsyncadd [#allocation6], %s46
      %s48 = sshll.u32 [#allocation7], 4
      %s49 = int_to_ptr.vmem [resolvable:$true] %s48
      %54 = dma.vmem_to_hbm [thread:$0]  %s49, 256, %s3, [#allocation6], 128, 128, 8
    $region21: #{tpu_custom_call.1} parent=1 // pred_fallthru
      _
    // Predicated region
    $region22: #{tpu_custom_call.1} parent=1 // pred_check
      _
    $region23: #{tpu_custom_call.1} parent=1 // pred_check_branch
      %56 = sbr.rel (0) target = $region25
    $region24: #{tpu_custom_call.1} parent=1 // pred_region
      %57 = dma.done [#allocation6], 256
    $region25: #{tpu_custom_call.1} parent=1 // pred_fallthru
      _
    %58 = vsyncpa [#allocation5], 1
    %59 = vsyncpa [#allocation6], 1

</llo_original>
